<compile_context>
chip_gen: v7x
topology: tpu7x:2x2x1
jax: 0.10.0
libtpu: 0.0.40
codegen_flags: <defaults>
</compile_context>

<pallas_src>
import jax
import jax.numpy as jnp
from jax.experimental import pallas as pl
from jax.experimental.pallas import tpu as pltpu


def _round_up(x, m):
    return ((x + m - 1) // m) * m


def cross_compress_kernel(v_ref, e_ref, p_ref, s_ref, vout_ref, eout_ref):
    """One (tb, W) block; W = pack * dim (pack batch rows per 128-lane row).

    p_ref rows: 0 = w_vv + w_ev, 1 = w_ve + w_vv, 2 = b_v, 3 = b_e (each tiled
    `pack` times along the lanes); rows 4-7 are zero padding.
    s_ref is the (W, W) block-diagonal 0/1 "segment sum" matrix: (p @ S)[r, l]
    is the sum of p[r, :] over the dim-wide lane segment containing lane l,
    i.e. the per-batch-row dot product broadcast back onto its own lanes.
    """
    w_v = p_ref[0:1, :]                        # (1, W)
    w_e = p_ref[1:2, :]
    b_v = p_ref[2:3, :]
    b_e = p_ref[3:4, :]
    s = s_ref[...]                             # (W, W), exact zeros/ones

    # Finish the v-path before starting the e-path (halves peak live (tb, W)
    # intermediates -> less vreg/spill pressure at large tiles).  Ref reads are
    # repeated on purpose: re-loading from VMEM is far cheaper than keeping
    # hundreds of vregs live across the matmul.
    d_v = jnp.dot(v_ref[...].astype(jnp.float32) * w_v, s,
                  preferred_element_type=jnp.float32)          # (tb, W)
    vout_ref[...] = (e_ref[...].astype(jnp.float32) * d_v + b_v
                     ).astype(vout_ref.dtype)

    d_e = jnp.dot(v_ref[...].astype(jnp.float32) * w_e, s,
                  preferred_element_type=jnp.float32)
    eout_ref[...] = (e_ref[...].astype(jnp.float32) * d_e + b_e
                     ).astype(eout_ref.dtype)


def cross_and_compress(v, e, params, *, tb_max=4096):
    """v, e: (B, 1, dim).  Returns (v_out, e_out), each (B, 1, dim)."""
    B, one, dim = v.shape
    assert one == 1 and e.shape == (B, 1, dim)
    assert tb_max % 8 == 0, "tb_max must be a multiple of 8 (sublane tiling)"
    dtype = v.dtype
    itemsize = jnp.dtype(dtype).itemsize

    # Lane-pack several batch rows per 128-lane row when dim divides 128, so
    # loads/compute/stores are lane-dense (no masked vst.msk partial stores).
    pack = 128 // dim if (dim <= 128 and 128 % dim == 0) else 1
    W = pack * dim
    R = pl.cdiv(B, pack)                 # packed rows

    # (B, dim) -> (R, W) is a free row-major reshape.  Only when B is not a
    # multiple of `pack` do we pad (<= pack-1 rows, one copy) and slice after.
    # TODO(synk): handle the <= pack-1 remainder rows separately so even
    # pack-unaligned batches need no pad/slice copies.
    v2 = v.reshape(B, dim)
    e2 = e.reshape(B, dim)
    Bpk = R * pack
    if Bpk != B:
        v2 = jnp.pad(v2, ((0, Bpk - B), (0, 0)))
        e2 = jnp.pad(e2, ((0, Bpk - B), (0, 0)))
    v2 = v2.reshape(R, W)
    e2 = e2.reshape(R, W)

    # Tile choice: biggest tile <= tb_max, and whenever we split at all, split
    # into an even number of blocks so both v7x TensorCores stay busy (no-op on
    # single-TC v5e/v6e).  R itself is NOT padded: Pallas masks the ragged last
    # block (OOB output rows are discarded; OOB input rows only feed OOB rows).
    if R <= 16:
        tb = R                                      # single full-array block
    else:
        n_target = _round_up(max(2, pl.cdiv(R, tb_max)), 2)
        tb = _round_up(pl.cdiv(R, n_target), 8)
    n_blocks = pl.cdiv(R, tb)

    # One resident (8, W) parameter block: combined weights + biases (one DMA,
    # constant index_map).  w_vv is shared by both outputs, mirroring the
    # module's duplicate parameter definition.
    def tiled(x):
        return jnp.tile(jnp.asarray(x, jnp.float32).reshape(1, dim), (1, pack))

    w_for_v = tiled(params["w_vv"]) + tiled(params["w_ev"])   # drives v_out
    w_for_e = tiled(params["w_ve"]) + tiled(params["w_vv"])   # drives e_out
    pblock = jnp.concatenate(
        [w_for_v, w_for_e, tiled(params["b_v"]), tiled(params["b_e"]),
         jnp.zeros((4, W), jnp.float32)], axis=0)              # (8, W)

    # Resident (W, W) block-diagonal segment-sum matrix for the MXU (64 KiB for
    # W=128).  Entries are exact 0/1, so the MXU reduction is numerically a
    # plain f32-accumulated sum of the products.
    seg = jnp.arange(W, dtype=jnp.int32) // dim
    smat = (seg[:, None] == seg[None, :]).astype(jnp.float32)

    row_spec = pl.BlockSpec((tb, W), lambda i: (i, 0))
    param_spec = pl.BlockSpec((8, W), lambda i: (0, 0))
    s_spec = pl.BlockSpec((W, W), lambda i: (0, 0))

    # HBM traffic: 2 input + 2 output streams.  Flops: two (tb,W)x(W,W)
    # segment-sum matmuls per block plus elementwise work.
    cost = pl.CostEstimate(
        flops=int(4 * R * W * W + 8 * R * W),
        transcendentals=0,
        bytes_accessed=int(4 * R * W * itemsize))

    # Streaming working set per grid step (2 in + 2 out blocks), double
    # buffered, plus headroom for in-kernel intermediates; capped at 48 MiB so
    # it stays well under v7x's 64 MiB physical VMEM per TensorCore.
    per_step = 4 * tb * W * itemsize
    vmem_limit = int(min(48 * 1024 * 1024,
                         max(32 * 1024 * 1024, 5 * per_step)))

    v_out, e_out = pl.pallas_call(
        cross_compress_kernel,
        out_shape=(jax.ShapeDtypeStruct((R, W), dtype),
                   jax.ShapeDtypeStruct((R, W), dtype)),
        grid_spec=pltpu.PrefetchScalarGridSpec(
            num_scalar_prefetch=0,
            grid=(n_blocks,),
            in_specs=[row_spec, row_spec, param_spec, s_spec],
            out_specs=[row_spec, row_spec]),
        compiler_params=pltpu.CompilerParams(
            dimension_semantics=("parallel",),
            vmem_limit_bytes=vmem_limit),
        cost_estimate=cost,
    )(v2, e2, pblock, smat)

    v_flat = v_out.reshape(Bpk, dim)
    e_flat = e_out.reshape(Bpk, dim)
    if Bpk != B:
        v_flat = v_flat[:B]
        e_flat = e_flat[:B]
    return v_flat.reshape(B, 1, dim), e_flat.reshape(B, 1, dim)


def reference(v, e, params):
    """Pure-JAX transcription of the PyTorch forward (f32 precision)."""
    dim = v.shape[-1]
    hi = jax.lax.Precision.HIGHEST
    C = jnp.matmul(e.reshape(-1, dim, 1), v, precision=hi)          # (B, d, d)
    v_new = (jnp.matmul(C, params["w_vv"], precision=hi)
             + jnp.matmul(C, params["w_ev"], precision=hi) + params["b_v"])
    e_new = (jnp.matmul(C, params["w_ve"], precision=hi)
             + jnp.matmul(C, params["w_vv"], precision=hi) + params["b_e"])
    return v_new.reshape(-1, 1, dim), e_new.reshape(-1, 1, dim)


def _make_inputs(key, batch, dim):
    k_v, k_e, k1, k2, k3, k4, k5 = jax.random.split(key, 7)
    v = jax.random.normal(k_v, (batch, 1, dim), dtype=jnp.float32)
    e = jax.random.normal(k_e, (batch, 1, dim), dtype=jnp.float32)
    params = {
        "w_vv": jax.random.normal(k1, (dim, 1), dtype=jnp.float32),
        "w_ev": jax.random.normal(k2, (dim, 1), dtype=jnp.float32),
        "w_ve": jax.random.normal(k3, (dim, 1), dtype=jnp.float32),
        "b_v":  jax.random.normal(k4, (dim, 1), dtype=jnp.float32),
        "b_e":  jax.random.normal(k5, (dim, 1), dtype=jnp.float32),
    }
    return v, e, params


if __name__ == "__main__":
    dim = 32
    k_small, k_big = jax.random.split(jax.random.PRNGKey(0))

    # Small sanity check (single block; B=16 packs to a (4, 128) tile).
    batch = 16
    v, e, params = _make_inputs(k_small, batch, dim)
    v_out, e_out = cross_and_compress(v, e, params)
    jax.block_until_ready((v_out, e_out))
    v_ref, e_ref = reference(v, e, params)
    assert v_out.shape == (batch, 1, dim) and e_out.shape == (batch, 1, dim)
    assert jnp.allclose(v_out, v_ref, atol=1e-3, rtol=1e-3)
    assert jnp.allclose(e_out, e_ref, atol=1e-3, rtol=1e-3)

    # Multi-block check: even parallel grid split, ragged last block, and a
    # batch that is not a multiple of the lane-packing factor.
    batch2 = 1234
    v, e, params = _make_inputs(k_big, batch2, dim)
    v_out, e_out = cross_and_compress(v, e, params, tb_max=128)
    jax.block_until_ready((v_out, e_out))
    v_ref, e_ref = reference(v, e, params)
    assert v_out.shape == (batch2, 1, dim) and e_out.shape == (batch2, 1, dim)
    assert jnp.allclose(v_out, v_ref, atol=1e-3, rtol=1e-3)
    assert jnp.allclose(e_out, e_ref, atol=1e-3, rtol=1e-3)

    print("KERNEL_OK")
</pallas_src>

<mosaic_0001>
module attributes {stable_mosaic.version = 11 : i64} {
  func.func @cross_compress_kernel(%arg0: i32, %arg1: memref<4x128xf32, #tpu.memory_space<vmem>>, %arg2: memref<4x128xf32, #tpu.memory_space<vmem>>, %arg3: memref<8x128xf32, #tpu.memory_space<vmem>>, %arg4: memref<128x128xf32, #tpu.memory_space<vmem>>, %arg5: memref<4x128xf32, #tpu.memory_space<vmem>>, %arg6: memref<4x128xf32, #tpu.memory_space<vmem>>) attributes {dimension_semantics = [#tpu.dimension_semantics<parallel>], iteration_bounds = array<i64: 1>, scalar_prefetch = 0 : i64, scratch_operands = 0 : i64, tpu.core_type = #tpu.core_type<tc>, window_params = [{transform_indices = @transform_0, window_bounds = array<i64: 4, 128>}, {transform_indices = @transform_1, window_bounds = array<i64: 4, 128>}, {pipeline_mode = #tpu.pipeline_mode<synchronous>, transform_indices = @transform_2, window_bounds = array<i64: 8, 128>}, {pipeline_mode = #tpu.pipeline_mode<synchronous>, transform_indices = @transform_3, window_bounds = array<i64: 128, 128>}, {transform_indices = @transform_4, window_bounds = array<i64: 4, 128>}, {transform_indices = @transform_5, window_bounds = array<i64: 4, 128>}]} {
    %c0 = arith.constant 0 : index
    %c0_0 = arith.constant 0 : index
    %0 = vector.load %arg3[%c0, %c0_0] : memref<8x128xf32, #tpu.memory_space<vmem>>, vector<1x128xf32>
    %c1 = arith.constant 1 : index
    %c0_1 = arith.constant 0 : index
    %1 = vector.load %arg3[%c1, %c0_1] : memref<8x128xf32, #tpu.memory_space<vmem>>, vector<1x128xf32>
    %c2 = arith.constant 2 : index
    %c0_2 = arith.constant 0 : index
    %2 = vector.load %arg3[%c2, %c0_2] : memref<8x128xf32, #tpu.memory_space<vmem>>, vector<1x128xf32>
    %c3 = arith.constant 3 : index
    %c0_3 = arith.constant 0 : index
    %3 = vector.load %arg3[%c3, %c0_3] : memref<8x128xf32, #tpu.memory_space<vmem>>, vector<1x128xf32>
    %c0_4 = arith.constant 0 : index
    %c0_5 = arith.constant 0 : index
    %4 = vector.load %arg4[%c0_4, %c0_5] : memref<128x128xf32, #tpu.memory_space<vmem>>, vector<128x128xf32>
    %c0_6 = arith.constant 0 : index
    %c0_7 = arith.constant 0 : index
    %5 = vector.load %arg1[%c0_6, %c0_7] : memref<4x128xf32, #tpu.memory_space<vmem>>, vector<4x128xf32>
    %6 = vector.broadcast %0 : vector<1x128xf32> to vector<4x128xf32>
    %7 = arith.mulf %5, %6 : vector<4x128xf32>
    %cst = arith.constant dense<0.000000e+00> : vector<4x128xf32>
    %8 = tpu.matmul %7, %4, %cst {dimension_numbers = #tpu.dot_dimension_numbers<[1], [0], [0], [1], [0, 0, 1, 1], [], []>} : vector<4x128xf32>, vector<128x128xf32>, vector<4x128xf32> -> vector<4x128xf32>
    %c0_8 = arith.constant 0 : index
    %c0_9 = arith.constant 0 : index
    %9 = vector.load %arg2[%c0_8, %c0_9] : memref<4x128xf32, #tpu.memory_space<vmem>>, vector<4x128xf32>
    %10 = arith.mulf %9, %8 : vector<4x128xf32>
    %11 = vector.broadcast %2 : vector<1x128xf32> to vector<4x128xf32>
    %12 = arith.addf %10, %11 : vector<4x128xf32>
    %c0_10 = arith.constant 0 : index
    %c0_11 = arith.constant 0 : index
    %13 = vector.load %arg5[%c0_10, %c0_11] : memref<4x128xf32, #tpu.memory_space<vmem>>, vector<4x128xf32>
    tpu.vector_store %arg5[%c0_10, %c0_11], %12 {strides = array<i32>} : memref<4x128xf32, #tpu.memory_space<vmem>>, vector<4x128xf32>,
    %c0_12 = arith.constant 0 : index
    %c0_13 = arith.constant 0 : index
    %14 = vector.load %arg1[%c0_12, %c0_13] : memref<4x128xf32, #tpu.memory_space<vmem>>, vector<4x128xf32>
    %15 = vector.broadcast %1 : vector<1x128xf32> to vector<4x128xf32>
    %16 = arith.mulf %14, %15 : vector<4x128xf32>
    %cst_14 = arith.constant dense<0.000000e+00> : vector<4x128xf32>
    %17 = tpu.matmul %16, %4, %cst_14 {dimension_numbers = #tpu.dot_dimension_numbers<[1], [0], [0], [1], [0, 0, 1, 1], [], []>} : vector<4x128xf32>, vector<128x128xf32>, vector<4x128xf32> -> vector<4x128xf32>
    %c0_15 = arith.constant 0 : index
    %c0_16 = arith.constant 0 : index
    %18 = vector.load %arg2[%c0_15, %c0_16] : memref<4x128xf32, #tpu.memory_space<vmem>>, vector<4x128xf32>
    %19 = arith.mulf %18, %17 : vector<4x128xf32>
    %20 = vector.broadcast %3 : vector<1x128xf32> to vector<4x128xf32>
    %21 = arith.addf %19, %20 : vector<4x128xf32>
    %c0_17 = arith.constant 0 : index
    %c0_18 = arith.constant 0 : index
    %22 = vector.load %arg6[%c0_17, %c0_18] : memref<4x128xf32, #tpu.memory_space<vmem>>, vector<4x128xf32>
    tpu.vector_store %arg6[%c0_17, %c0_18], %21 {strides = array<i32>} : memref<4x128xf32, #tpu.memory_space<vmem>>, vector<4x128xf32>,
    return
  }
  func.func @transform_0(%arg0: i32) -> (i32, i32) {
    %c0_i32 = arith.constant 0 : i32
    %c0_i32_0 = arith.constant 0 : i32
    return %arg0, %c0_i32 : i32, i32
  }
  func.func @transform_1(%arg0: i32) -> (i32, i32) {
    %c0_i32 = arith.constant 0 : i32
    %c0_i32_0 = arith.constant 0 : i32
    return %arg0, %c0_i32 : i32, i32
  }
  func.func @transform_2(%arg0: i32) -> (i32, i32) {
    %c0_i32 = arith.constant 0 : i32
    %c0_i32_0 = arith.constant 0 : i32
    %c0_i32_1 = arith.constant 0 : i32
    return %c0_i32, %c0_i32_0 : i32, i32
  }
  func.func @transform_3(%arg0: i32) -> (i32, i32) {
    %c0_i32 = arith.constant 0 : i32
    %c0_i32_0 = arith.constant 0 : i32
    %c0_i32_1 = arith.constant 0 : i32
    return %c0_i32, %c0_i32_0 : i32, i32
  }
  func.func @transform_4(%arg0: i32) -> (i32, i32) {
    %c0_i32 = arith.constant 0 : i32
    %c0_i32_0 = arith.constant 0 : i32
    return %arg0, %c0_i32 : i32, i32
  }
  func.func @transform_5(%arg0: i32) -> (i32, i32) {
    %c0_i32 = arith.constant 0 : i32
    %c0_i32_0 = arith.constant 0 : i32
    return %arg0, %c0_i32 : i32, i32
  }
}

</mosaic_0001>

<llo_original>
// kernel: tpu_custom_call.1
$region0: #{tpu_custom_call.1}
  #allocation0 [shape = 'u32[]', space=smem, size = 0x4, offset = 0x4, fixed_abs, tag = 'smem constant byte address 0x4 - core index']
  #allocation1 [shape = 'u32[144,128]{1,0:T(1,128)}', space=vmem, size = 0x12000, scoped, tag = 'internal scratch']
  %s0 = inlined_call_operand.hbm [shape: f32[4,128], index: 0, kind: input, shape index: {}]
  %s1 = inlined_call_operand.hbm [shape: f32[4,128], index: 1, kind: input, shape index: {}]
  %s2 = inlined_call_operand.hbm [shape: f32[8,128], index: 2, kind: input, shape index: {}]
  %s3 = inlined_call_operand.hbm [shape: f32[128,128], index: 3, kind: input, shape index: {}]
  %s4 = inlined_call_operand.hbm [shape: f32[4,128], index: 4, kind: output, shape index: {0}]
  %s5 = inlined_call_operand.hbm [shape: f32[4,128], index: 5, kind: output, shape index: {1}]
  %6 = xla_tuple %s4, %s5
  %s7 = sld [smem:[#allocation0]]
  $region50: #{tpu_custom_call.1} parent=0
    _
  %s9 = ssub.s32 1, %s7
  %s10 = scalar_select 0, %s9, %s7
  $region1: #{tpu_custom_call.1} parent=0
    #allocation2 [shape = 'u8[2048]{0}', space=vmem, size = 0x800, scoped, tag = 'input window, operand 0, single buffered']
    #allocation3 [shape = 's32[1]{0}', space=sflag, size = 0x4, scoped, tag = 'scoped memory for tpu_custom_call.1']
    #allocation4 [shape = 's32[1]{0}', space=sflag, size = 0x4, scoped, tag = 'scoped memory for tpu_custom_call.1']
    #allocation5 [shape = 'u8[2048]{0}', space=vmem, size = 0x800, scoped, tag = 'input window, operand 1, single buffered']
    #allocation6 [shape = 's32[1]{0}', space=sflag, size = 0x4, scoped, tag = 'scoped memory for tpu_custom_call.1']
    #allocation7 [shape = 'u8[4096]{0}', space=vmem, size = 0x1000, scoped, tag = 'input window, operand 2, single buffered']
    #allocation8 [shape = 'u8[65536]{0}', space=vmem, size = 0x10000, scoped, tag = 'input window, operand 3, single buffered']
    #allocation9 [shape = 's32[1]{0}', space=sflag, size = 0x4, scoped, tag = 'scoped memory for tpu_custom_call.1']
    #allocation10 [shape = 'u8[2048]{0}', space=vmem, size = 0x800, scoped, tag = 'output window, operand 0, single buffered']
    #allocation11 [shape = 'u8[2048]{0}', space=vmem, size = 0x800, scoped, tag = 'output window, operand 1, single buffered']
    #allocation12 [shape = 's32[1]{0}', space=sflag, size = 0x4, scoped, tag = 'scoped memory for tpu_custom_call.1']
    %11 = vsyncpa [#allocation3], 0
    %12 = vsyncpa [#allocation6], 0
    %13 = vsyncpa [#allocation9], 0
    %14 = vsyncpa [#allocation4], 0
    %15 = vsyncpa [#allocation12], 0
    // Predicated region
    $region2: #{tpu_custom_call.1} parent=1 // pred_check
      _
    $region3: #{tpu_custom_call.1} parent=1 // pred_check_branch
      %17 = sbr.rel (0) target = $region5
    $region4: #{tpu_custom_call.1} parent=1 // pred_region
      %s19 = ssub.s32 64, 64
      %20 = vsyncadd [#allocation3], %s19
      %s22 = sshll.u32 [#allocation2], 4
      %s23 = int_to_ptr.vmem [resolvable:$true] %s22
      %25 = dma.hbm_to_vmem [thread:$0]  %s0, 64, %s23, [#allocation3]
    $region5: #{tpu_custom_call.1} parent=1 // pred_fallthru
      _
    // Predicated region
    $region6: #{tpu_custom_call.1} parent=1 // pred_check
      _
    $region7: #{tpu_custom_call.1} parent=1 // pred_check_branch
      %27 = sbr.rel (0) target = $region9
    $region8: #{tpu_custom_call.1} parent=1 // pred_region
      %s29 = ssub.s32 64, 64
      %30 = vsyncadd [#allocation6], %s29
      %s32 = sshll.u32 [#allocation5], 4
      %s33 = int_to_ptr.vmem [resolvable:$true] %s32
      %35 = dma.hbm_to_vmem [thread:$0]  %s1, 64, %s33, [#allocation6]
    $region9: #{tpu_custom_call.1} parent=1 // pred_fallthru
      _
    // Predicated region
    $region10: #{tpu_custom_call.1} parent=1 // pred_check
      _
    $region11: #{tpu_custom_call.1} parent=1 // pred_check_branch
      %37 = sbr.rel (0) target = $region13
    $region12: #{tpu_custom_call.1} parent=1 // pred_region
      %s39 = ssub.s32 128, 128
      %40 = vsyncadd [#allocation6], %s39
      %s42 = sshll.u32 [#allocation7], 4
      %s43 = int_to_ptr.vmem [resolvable:$true] %s42
      %45 = dma.hbm_to_vmem [thread:$0]  %s2, 128, %s43, [#allocation6]
    $region13: #{tpu_custom_call.1} parent=1 // pred_fallthru
      _
    // Predicated region
    $region14: #{tpu_custom_call.1} parent=1 // pred_check
      _
    $region15: #{tpu_custom_call.1} parent=1 // pred_check_branch
      %47 = sbr.rel (0) target = $region17
    $region16: #{tpu_custom_call.1} parent=1 // pred_region
      %s49 = ssub.s32 2048, 2048
      %50 = vsyncadd [#allocation9], %s49
      %s51 = sshll.u32 [#allocation8], 4
      %s52 = int_to_ptr.vmem [resolvable:$true] %s51
      %57 = dma.hbm_to_vmem [thread:$0]  %s3, 2048, %s52, [#allocation9], 128, 128, 8
    $region17: #{tpu_custom_call.1} parent=1 // pred_fallthru
      _
    // Predicated region
    $region18: #{tpu_custom_call.1} parent=1 // pred_check
      _
    $region19: #{tpu_custom_call.1} parent=1 // pred_check_branch
      %59 = sbr.rel (0) target = $region21
    $region20: #{tpu_custom_call.1} parent=1 // pred_region
      %60 = dma.done [#allocation3], 64
    $region21: #{tpu_custom_call.1} parent=1 // pred_fallthru
      _
    // Predicated region
    $region22: #{tpu_custom_call.1} parent=1 // pred_check
      _
    $region23: #{tpu_custom_call.1} parent=1 // pred_check_branch
      %62 = sbr.rel (0) target = $region25
    $region24: #{tpu_custom_call.1} parent=1 // pred_region
      %63 = dma.done [#allocation6], 64
    $region25: #{tpu_custom_call.1} parent=1 // pred_fallthru
      _
    // Predicated region
    $region26: #{tpu_custom_call.1} parent=1 // pred_check
      _
    $region27: #{tpu_custom_call.1} parent=1 // pred_check_branch
      %65 = sbr.rel (0) target = $region29
    $region28: #{tpu_custom_call.1} parent=1 // pred_region
      %66 = dma.done [#allocation6], 128
    $region29: #{tpu_custom_call.1} parent=1 // pred_fallthru
      _
    // Predicated region
    $region30: #{tpu_custom_call.1} parent=1 // pred_check
      _
    $region31: #{tpu_custom_call.1} parent=1 // pred_check_branch
      %68 = sbr.rel (0) target = $region33
    $region32: #{tpu_custom_call.1} parent=1 // pred_region
      %69 = dma.done [#allocation9], 2048
    $region33: #{tpu_custom_call.1} parent=1 // pred_fallthru
      _
    %v70 = vld [vmem:[#allocation7] sm:$0x1]
    %v71 = vld [vmem:[#allocation7 + $0x1] sm:$0x1]
    %v72 = vld [vmem:[#allocation7 + $0x2] sm:$0x1]
    %v73 = vld [vmem:[#allocation7 + $0x3] sm:$0x1]
    %v74 = vld [vmem:[#allocation8] sm:$0xff]
    %v75 = vld [vmem:[#allocation8 + $0x8] sm:$0xff]
    %v76 = vld [vmem:[#allocation8 + $0x10] sm:$0xff]
    %v77 = vld [vmem:[#allocation8 + $0x18] sm:$0xff]
    %v78 = vld [vmem:[#allocation8 + $0x20] sm:$0xff]
    %v79 = vld [vmem:[#allocation8 + $0x28] sm:$0xff]
    %v80 = vld [vmem:[#allocation8 + $0x30] sm:$0xff]
    %v81 = vld [vmem:[#allocation8 + $0x38] sm:$0xff]
    %v82 = vld [vmem:[#allocation8 + $0x40] sm:$0xff]
    %v83 = vld [vmem:[#allocation8 + $0x48] sm:$0xff]
    %v84 = vld [vmem:[#allocation8 + $0x50] sm:$0xff]
    %v85 = vld [vmem:[#allocation8 + $0x58] sm:$0xff]
    %v86 = vld [vmem:[#allocation8 + $0x60] sm:$0xff]
    %v87 = vld [vmem:[#allocation8 + $0x68] sm:$0xff]
    %v88 = vld [vmem:[#allocation8 + $0x70] sm:$0xff]
    %v89 = vld [vmem:[#allocation8 + $0x78] sm:$0xff]
    %v90 = vld [vmem:[#allocation2] sm:$0xf]
    %v91 = vlaneseq
    %v92 = vshrl.u32 %v91, 7
    %v93 = vsub.s32 0, %v92
    %v94 = vrot.slane %v70, %v93
    %v95 = vmul.f32 %v90, %v94
    %96 = vmatprep.subr.mxu0 0.0
    %97 = vmatpush1.msra.mxu0 %v74
    %98 = vmatprep.subr.mxu0 0.0
    %99 = vmatpush1.msra.mxu0 %v75
    %100 = vmatprep.subr.mxu0 0.0
    %101 = vmatpush1.msra.mxu0 %v76
    %102 = vmatprep.subr.mxu0 0.0
    %103 = vmatpush1.msra.mxu0 %v77
    %104 = vmatprep.subr.mxu0 0.0
    %105 = vmatpush1.msra.mxu0 %v78
    %106 = vmatprep.subr.mxu0 0.0
    %107 = vmatpush1.msra.mxu0 %v79
    %108 = vmatprep.subr.mxu0 0.0
    %109 = vmatpush1.msra.mxu0 %v80
    %110 = vmatprep.subr.mxu0 0.0
    %111 = vmatpush1.msra.mxu0 %v81
    %112 = vmatprep.subr.mxu0 0.0
    %113 = vmatpush1.msra.mxu0 %v82
    %114 = vmatprep.subr.mxu0 0.0
    %115 = vmatpush1.msra.mxu0 %v83
    %116 = vmatprep.subr.mxu0 0.0
    %117 = vmatpush1.msra.mxu0 %v84
    %118 = vmatprep.subr.mxu0 0.0
    %119 = vmatpush1.msra.mxu0 %v85
    %120 = vmatprep.subr.mxu0 0.0
    %121 = vmatpush1.msra.mxu0 %v86
    %122 = vmatprep.subr.mxu0 0.0
    %123 = vmatpush1.msra.mxu0 %v87
    %124 = vmatprep.subr.mxu0 0.0
    %125 = vmatpush1.msra.mxu0 %v88
    %126 = vmatprep.subr.mxu0 0.0
    %127 = vmatpush1.msra.mxu0 %v89
    %128 = vmatprep.subr.mxu0 0.0
    %129 = vmatpush1.msra.mxu0 0.0
    %130 = vmatprep.subr.mxu0 0.0
    %131 = vmatpush1.msra.mxu0 0.0
    %132 = vmatprep.subr.mxu0 0.0
    %133 = vmatpush1.msra.mxu0 0.0
    %134 = vmatprep.subr.mxu0 0.0
    %135 = vmatpush1.msra.mxu0 0.0
    %136 = vmatprep.subr.mxu0 0.0
    %137 = vmatpush1.msra.mxu0 0.0
    %138 = vmatprep.subr.mxu0 0.0
    %139 = vmatpush1.msra.mxu0 0.0
    %140 = vmatprep.subr.mxu0 0.0
    %141 = vmatpush1.msra.mxu0 0.0
    %142 = vmatprep.subr.mxu0 0.0
    %143 = vmatpush1.msra.mxu0 0.0
    %144 = vmatprep.subr.mxu0 0.0
    %145 = vmatpush1.msra.mxu0 0.0
    %146 = vmatprep.subr.mxu0 0.0
    %147 = vmatpush1.msra.mxu0 0.0
    %148 = vmatprep.subr.mxu0 0.0
    %149 = vmatpush1.msra.mxu0 0.0
    %150 = vmatprep.subr.mxu0 0.0
    %151 = vmatpush1.msra.mxu0 0.0
    %152 = vmatprep.subr.mxu0 0.0
    %153 = vmatpush1.msra.mxu0 0.0
    %154 = vmatprep.subr.mxu0 0.0
    %155 = vmatpush1.msra.mxu0 0.0
    %156 = vmatprep.subr.mxu0 0.0
    %157 = vmatpush1.msra.mxu0 0.0
    %158 = vmatprep.subr.mxu0 0.0
    %159 = vmatpush1.msra.mxu0 0.0
    %160 = vmatprep.mubr.f32.mxu0 0.0
    %161 = vmatmul.mubr.f32.gmra.mrb[0].mxu0 %v95
    %v162 = vpop.f32.mrb[0].mxu0
    %v163 = vadd.f32 0.0, %v162
    %v164 = vpop.f32.mrb[0].mxu0
    %165 = vdwg.mxu0
    %v166 = vld [vmem:[#allocation5] sm:$0xf]
    %v167 = vmul.f32 %v166, %v163
    %v168 = vlaneseq
    %v169 = vshrl.u32 %v168, 7
    %v170 = vsub.s32 0, %v169
    %v171 = vrot.slane %v72, %v170
    %v172 = vadd.f32 %v167, %v171
    %173 = vst [vmem:[#allocation10] sm:$0xf] %v172
    %v174 = vld [vmem:[#allocation2] sm:$0xf]
    %v175 = vlaneseq
    %v176 = vshrl.u32 %v175, 7
    %v177 = vsub.s32 0, %v176
    %v178 = vrot.slane %v71, %v177
    %v179 = vmul.f32 %v174, %v178
    %180 = vmatprep.subr.mxu0 0.0
    %181 = vmatpush1.msra.mxu0 %v74
    %182 = vmatprep.subr.mxu0 0.0
    %183 = vmatpush1.msra.mxu0 %v75
    %184 = vmatprep.subr.mxu0 0.0
    %185 = vmatpush1.msra.mxu0 %v76
    %186 = vmatprep.subr.mxu0 0.0
    %187 = vmatpush1.msra.mxu0 %v77
    %188 = vmatprep.subr.mxu0 0.0
    %189 = vmatpush1.msra.mxu0 %v78
    %190 = vmatprep.subr.mxu0 0.0
    %191 = vmatpush1.msra.mxu0 %v79
    %192 = vmatprep.subr.mxu0 0.0
    %193 = vmatpush1.msra.mxu0 %v80
    %194 = vmatprep.subr.mxu0 0.0
    %195 = vmatpush1.msra.mxu0 %v81
    %196 = vmatprep.subr.mxu0 0.0
    %197 = vmatpush1.msra.mxu0 %v82
    %198 = vmatprep.subr.mxu0 0.0
    %199 = vmatpush1.msra.mxu0 %v83
    %200 = vmatprep.subr.mxu0 0.0
    %201 = vmatpush1.msra.mxu0 %v84
    %202 = vmatprep.subr.mxu0 0.0
    %203 = vmatpush1.msra.mxu0 %v85
    %204 = vmatprep.subr.mxu0 0.0
    %205 = vmatpush1.msra.mxu0 %v86
    %206 = vmatprep.subr.mxu0 0.0
    %207 = vmatpush1.msra.mxu0 %v87
    %208 = vmatprep.subr.mxu0 0.0
    %209 = vmatpush1.msra.mxu0 %v88
    %210 = vmatprep.subr.mxu0 0.0
    %211 = vmatpush1.msra.mxu0 %v89
    %212 = vmatprep.subr.mxu0 0.0
    %213 = vmatpush1.msra.mxu0 0.0
    %214 = vmatprep.subr.mxu0 0.0
    %215 = vmatpush1.msra.mxu0 0.0
    %216 = vmatprep.subr.mxu0 0.0
    %217 = vmatpush1.msra.mxu0 0.0
    %218 = vmatprep.subr.mxu0 0.0
    %219 = vmatpush1.msra.mxu0 0.0
    %220 = vmatprep.subr.mxu0 0.0
    %221 = vmatpush1.msra.mxu0 0.0
    %222 = vmatprep.subr.mxu0 0.0
    %223 = vmatpush1.msra.mxu0 0.0
    %224 = vmatprep.subr.mxu0 0.0
    %225 = vmatpush1.msra.mxu0 0.0
    %226 = vmatprep.subr.mxu0 0.0
    %227 = vmatpush1.msra.mxu0 0.0
    %228 = vmatprep.subr.mxu0 0.0
    %229 = vmatpush1.msra.mxu0 0.0
    %230 = vmatprep.subr.mxu0 0.0
    %231 = vmatpush1.msra.mxu0 0.0
    %232 = vmatprep.subr.mxu0 0.0
    %233 = vmatpush1.msra.mxu0 0.0
    %234 = vmatprep.subr.mxu0 0.0
    %235 = vmatpush1.msra.mxu0 0.0
    %236 = vmatprep.subr.mxu0 0.0
    %237 = vmatpush1.msra.mxu0 0.0
    %238 = vmatprep.subr.mxu0 0.0
    %239 = vmatpush1.msra.mxu0 0.0
    %240 = vmatprep.subr.mxu0 0.0
    %241 = vmatpush1.msra.mxu0 0.0
    %242 = vmatprep.subr.mxu0 0.0
    %243 = vmatpush1.msra.mxu0 0.0
    %244 = vmatprep.mubr.f32.mxu0 0.0
    %245 = vmatmul.mubr.f32.gmra.mrb[0].mxu0 %v179
    %v246 = vpop.f32.mrb[0].mxu0
    %v247 = vadd.f32 0.0, %v246
    %v248 = vpop.f32.mrb[0].mxu0
    %249 = vdwg.mxu0
    %v250 = vld [vmem:[#allocation5] sm:$0xf]
    %v251 = vmul.f32 %v250, %v247
    %v252 = vlaneseq
    %v253 = vshrl.u32 %v252, 7
    %v254 = vsub.s32 0, %v253
    %v255 = vrot.slane %v73, %v254
    %v256 = vadd.f32 %v251, %v255
    %257 = vst [vmem:[#allocation11] sm:$0xf] %v256
    // Predicated region
    $region34: #{tpu_custom_call.1} parent=1 // pred_check
      _
    $region35: #{tpu_custom_call.1} parent=1 // pred_check_branch
      %259 = sbr.rel (0) target = $region37
    $region36: #{tpu_custom_call.1} parent=1 // pred_region
      %s261 = ssub.s32 64, 64
      %262 = vsyncadd [#allocation4], %s261
      %s264 = sshll.u32 [#allocation10], 4
      %s265 = int_to_ptr.vmem [resolvable:$true] %s264
      %267 = dma.vmem_to_hbm [thread:$0]  %s265, 64, %s4, [#allocation4]
    $region37: #{tpu_custom_call.1} parent=1 // pred_fallthru
      _
    // Predicated region
    $region38: #{tpu_custom_call.1} parent=1 // pred_check
      _
    $region39: #{tpu_custom_call.1} parent=1 // pred_check_branch
      %269 = sbr.rel (0) target = $region41
    $region40: #{tpu_custom_call.1} parent=1 // pred_region
      %s271 = ssub.s32 64, 64
      %272 = vsyncadd [#allocation12], %s271
      %s274 = sshll.u32 [#allocation11], 4
      %s275 = int_to_ptr.vmem [resolvable:$true] %s274
      %277 = dma.vmem_to_hbm [thread:$0]  %s275, 64, %s5, [#allocation12]
    $region41: #{tpu_custom_call.1} parent=1 // pred_fallthru
      _
    // Predicated region
    $region42: #{tpu_custom_call.1} parent=1 // pred_check
      _
    $region43: #{tpu_custom_call.1} parent=1 // pred_check_branch
      %279 = sbr.rel (0) target = $region45
    $region44: #{tpu_custom_call.1} parent=1 // pred_region
      %280 = dma.done [#allocation4], 64
    $region45: #{tpu_custom_call.1} parent=1 // pred_fallthru
      _
    // Predicated region
    $region46: #{tpu_custom_call.1} parent=1 // pred_check
      _
    $region47: #{tpu_custom_call.1} parent=1 // pred_check_branch
      %282 = sbr.rel (0) target = $region49
    $region48: #{tpu_custom_call.1} parent=1 // pred_region
      %283 = dma.done [#allocation12], 64
    $region49: #{tpu_custom_call.1} parent=1 // pred_fallthru
      _
    %284 = vsyncpa [#allocation3], 1
    %285 = vsyncpa [#allocation6], 1
    %286 = vsyncpa [#allocation9], 1
    %287 = vsyncpa [#allocation4], 1
    %288 = vsyncpa [#allocation12], 1

</llo_original>
